<compile_context>
chip_gen: v7x
topology: tpu7x:2x2x1
jax: 0.10.0
libtpu: 0.0.40
codegen_flags: <defaults>
</compile_context>

<pallas_src>
import functools

import jax
import jax.numpy as jnp
from jax import lax
from jax.experimental import pallas as pl
from jax.experimental.pallas import tpu as pltpu


def _pad_same(kernel_size, dilation):
    # SAME padding for a stride-1 conv with dilation (mirror of get_pad_same).
    eff = dilation * (kernel_size - 1) + 1
    pad = max(eff - 1, 0)
    lo = pad // 2
    return lo, pad - lo


def _round_up(x, m):
    return (x + m - 1) // m * m


# Monotone (non-decreasing) activations: pool(act(z)) == act(pool(z)), which
# lets the kernel take the 2x2 max BEFORE the single bias+activation.
_MONOTONE_ACTS = ("relu", "tanh", "sigmoid")


def _activation(a, act_fn):
    if act_fn == "relu":
        return jnp.maximum(a, 0.0)
    if act_fn == "tanh":
        return jnp.tanh(a)
    if act_fn == "sigmoid":
        return jax.nn.sigmoid(a)
    raise ValueError(f"unsupported act_fn: {act_fn}")


def _lane_tile(m_pad, cap=1024):
    # Largest multiple of 128 that divides m_pad and is <= cap.
    best = 128
    for d in range(1, m_pad // 128 + 1):
        t = 128 * d
        if t > cap:
            break
        if m_pad % t == 0:
            best = t
    return best


def _conv_pool_kernel(x_ref, w_ref, b_ref, o_ref, *, act_fn):
    # x_ref: (4, KKC, TM) im2col patches, one slab per 2x2-pool tap (built in
    #        the wrapper at pooled-output resolution -> lane-dense, no
    #        in-kernel gather / compaction).
    # w_ref: (Cout, KKC)   b_ref: (Cout, 1)   o_ref: (Cout, TM)
    w = w_ref[...]
    a = jnp.dot(w, x_ref[0], preferred_element_type=jnp.float32)
    for p in range(1, 4):
        a = jnp.maximum(
            a, jnp.dot(w, x_ref[p], preferred_element_type=jnp.float32))
    # Activation is monotone -> max-then-act == act-then-max (1 activation
    # and 1 bias add instead of 4).
    o_ref[...] = _activation(a + b_ref[...], act_fn).astype(o_ref.dtype)


def _pool_only_kernel(x_ref, o_ref):
    # no_conv path: x_ref (4, C, TM) are the 4 pool taps; pure VPU max.
    a = jnp.maximum(jnp.maximum(x_ref[0], x_ref[1]),
                    jnp.maximum(x_ref[2], x_ref[3]))
    o_ref[...] = a.astype(o_ref.dtype)


@functools.partial(
    jax.jit,
    static_argnames=("conv_kernel_size", "conv_dilation", "no_conv",
                     "use_BN", "act_fn"))
def acell_forward(x, *, weight=None, bias=None, bn_gamma=None, bn_beta=None,
                  conv_kernel_size=3, conv_dilation=1, no_conv=False,
                  use_BN=False, act_fn="relu"):
    """ACell forward. x: (N, Cin, H, W) NCHW -> (N, Cout, H//2, W//2)."""
    N, Cin, H, W = x.shape
    Ho, Wo = H // 2, W // 2                  # MaxPool2d(2), floor mode
    M = N * Ho * Wo
    M_pad = _round_up(M, 128)                # lane-dense output for any shape
    TM = _lane_tile(M_pad)
    grid = (M_pad // TM,)

    # Channel-major f32 working copy; BN (training-mode batch stats) is a
    # per-channel affine that fuses into this relayout under jit.
    x_c = jnp.transpose(x, (1, 0, 2, 3)).astype(jnp.float32)   # (Cin,N,H,W)
    if use_BN:
        mean = jnp.mean(x, axis=(0, 2, 3)).astype(jnp.float32)
        var = jnp.var(x, axis=(0, 2, 3)).astype(jnp.float32)   # biased, like torch BN
        scale = bn_gamma.astype(jnp.float32) * lax.rsqrt(var + 1e-5)
        shift = bn_beta.astype(jnp.float32) - mean * scale
        x_c = x_c * scale[:, None, None, None] + shift[:, None, None, None]

    if no_conv:
        Cout = Cin
        Cout_p = _round_up(Cin, 8)
        # 4 pool taps as strided slices (XLA, under jit) -> (4, Cin, M).
        pool_parts = []
        for du in range(2):
            for dv in range(2):
                s = x_c[:, :, du:2 * Ho:2, dv:2 * Wo:2]        # (Cin,N,Ho,Wo)
                pool_parts.append(s.reshape(Cin, M))
        x4 = jnp.stack(pool_parts, axis=0)                     # (4, Cin, M)
        x4 = jnp.pad(x4, ((0, 0), (0, Cout_p - Cin), (0, M_pad - M)))

        in_bytes = 4 * Cout_p * TM * 4
        out_bytes = Cout_p * TM * 4
        vmem_budget = 2 * (in_bytes + out_bytes) + (4 << 20)
        out_flat = pl.pallas_call(
            _pool_only_kernel,
            out_shape=jax.ShapeDtypeStruct((Cout_p, M_pad), x.dtype),
            grid=grid,
            in_specs=[pl.BlockSpec((4, Cout_p, TM), lambda i: (0, 0, i))],
            out_specs=pl.BlockSpec((Cout_p, TM), lambda i: (0, i)),
            compiler_params=pltpu.CompilerParams(
                dimension_semantics=("parallel",),
                vmem_limit_bytes=min(max(vmem_budget, 16 << 20), 64 << 20)),
        )(x4)
    else:
        if act_fn not in _MONOTONE_ACTS:
            raise ValueError(
                f"act_fn {act_fn!r} must be monotone for the fused conv+pool")
        K, dil = conv_kernel_size, conv_dilation
        Cout = weight.shape[0]
        Cout_p = _round_up(Cout, 8)
        KKC = K * K * Cin
        KKC_p = _round_up(KKC, 8)

        lo, hi = _pad_same(K, dil)
        x_pad = jnp.pad(x_c, ((0, 0), (0, 0), (lo, hi), (lo, hi)))

        # im2col at pooled-output resolution: for pool tap (du,dv) and conv
        # tap (kh,kw), sample x_pad[c, b, 2u+du+kh*dil, 2v+dv+kw*dil].
        pool_parts = []
        for du in range(2):
            for dv in range(2):
                tap_parts = []
                for kh in range(K):
                    for kw in range(K):
                        r0 = du + kh * dil
                        c0 = dv + kw * dil
                        s = x_pad[:, :, r0:r0 + 2 * Ho:2, c0:c0 + 2 * Wo:2]
                        tap_parts.append(s.reshape(Cin, M))
                pool_parts.append(jnp.concatenate(tap_parts, axis=0))  # (KKC,M)
        patches = jnp.stack(pool_parts, axis=0)                        # (4,KKC,M)
        patches = jnp.pad(patches,
                          ((0, 0), (0, KKC_p - KKC), (0, M_pad - M)))

        # (Cout, Cin, K, K) -> (Cout, K*K*Cin); column = (kh*K+kw)*Cin + c,
        # matching the tap-major concatenation above.  Zero-pad to tiles.
        w2 = jnp.transpose(weight, (0, 2, 3, 1)).reshape(Cout, KKC)
        w2 = jnp.pad(w2.astype(jnp.float32),
                     ((0, Cout_p - Cout), (0, KKC_p - KKC)))
        b_vec = bias if bias is not None else jnp.zeros((Cout,), jnp.float32)
        b2 = jnp.pad(b_vec.astype(jnp.float32).reshape(Cout, 1),
                     ((0, Cout_p - Cout), (0, 0)))

        in_bytes = 4 * KKC_p * TM * 4
        out_bytes = Cout_p * TM * 4
        const_bytes = (Cout_p * KKC_p + Cout_p * 128) * 4
        vmem_budget = 2 * (in_bytes + out_bytes + const_bytes) + (4 << 20)
        out_flat = pl.pallas_call(
            functools.partial(_conv_pool_kernel, act_fn=act_fn),
            out_shape=jax.ShapeDtypeStruct((Cout_p, M_pad), x.dtype),
            grid=grid,
            in_specs=[
                pl.BlockSpec((4, KKC_p, TM), lambda i: (0, 0, i)),
                pl.BlockSpec((Cout_p, KKC_p), lambda i: (0, 0)),
                pl.BlockSpec((Cout_p, 1), lambda i: (0, 0)),
            ],
            out_specs=pl.BlockSpec((Cout_p, TM), lambda i: (0, i)),
            compiler_params=pltpu.CompilerParams(
                dimension_semantics=("parallel",),
                vmem_limit_bytes=min(max(vmem_budget, 16 << 20), 64 << 20)),
        )(patches, w2, b2)

    # (Cout_p, M_pad) -> (N, Cout, Ho, Wo); padded rows/lanes are dropped.
    out = out_flat[:Cout, :M].reshape(Cout, N, Ho, Wo)
    return jnp.transpose(out, (1, 0, 2, 3))


def _reference(x, weight, bias, bn_gamma, bn_beta, K, dil, no_conv, use_BN,
               act_fn):
    # Pure-JAX (XLA) reference mirroring the PyTorch module.
    a = x
    if use_BN:
        mean = jnp.mean(a, axis=(0, 2, 3), keepdims=True)
        var = jnp.var(a, axis=(0, 2, 3), keepdims=True)
        a = (a - mean) * lax.rsqrt(var + 1e-5)
        a = a * bn_gamma[None, :, None, None] + bn_beta[None, :, None, None]
    if not no_conv:
        lo, hi = _pad_same(K, dil)
        a = lax.conv_general_dilated(
            a, weight, (1, 1), [(lo, hi), (lo, hi)], rhs_dilation=(dil, dil),
            dimension_numbers=("NCHW", "OIHW", "NCHW"))
        if bias is not None:
            a = a + bias[None, :, None, None]
        a = _activation(a, act_fn)
    n, c, h, w = a.shape
    a = a[:, :, :2 * (h // 2), :2 * (w // 2)]
    return a.reshape(n, c, h // 2, 2, w // 2, 2).max(axis=(3, 5))


if __name__ == "__main__":
    master = jax.random.PRNGKey(0)

    def run_case(name, key, *, N, Cin, H, W, Cout=None, K=3, dil=1,
                 has_bias=True, no_conv=False, use_BN=False, act_fn="relu"):
        kx, kw, kb, kg, ke = jax.random.split(key, 5)
        x = jax.random.normal(kx, (N, Cin, H, W), dtype=jnp.float32)
        weight = bias = None
        if not no_conv:
            fan_in = Cin * K * K
            bound = 1.0 / (fan_in ** 0.5)
            weight = jax.random.uniform(kw, (Cout, Cin, K, K), jnp.float32,
                                        -bound, bound)
            if has_bias:
                bias = jax.random.uniform(kb, (Cout,), jnp.float32,
                                          -bound, bound)
        bn_gamma = bn_beta = None
        if use_BN:
            bn_gamma = jax.random.uniform(kg, (Cin,), jnp.float32, 0.5, 1.5)
            bn_beta = 0.1 * jax.random.normal(ke, (Cin,), jnp.float32)

        out = acell_forward(x, weight=weight, bias=bias, bn_gamma=bn_gamma,
                            bn_beta=bn_beta, conv_kernel_size=K,
                            conv_dilation=dil, no_conv=no_conv, use_BN=use_BN,
                            act_fn=act_fn)
        out = jax.block_until_ready(out)
        ref = _reference(x, weight, bias, bn_gamma, bn_beta, K, dil, no_conv,
                         use_BN, act_fn)
        c_out = Cin if no_conv else Cout
        assert out.shape == (N, c_out, H // 2, W // 2), (name, out.shape)
        err = float(jnp.max(jnp.abs(out - ref)))
        assert jnp.allclose(out, ref, atol=1e-4, rtol=1e-4), \
            f"{name}: max abs err {err}"

    keys = jax.random.split(master, 4)
    # ACell(4, 8, 3, 1, bias=True, no_conv=False, use_BN=True, 'relu')
    run_case("conv_bn_relu", keys[0], N=2, Cin=4, H=16, W=16, Cout=8, K=3,
             dil=1, has_bias=True, no_conv=False, use_BN=True, act_fn="relu")
    # no_conv path: BN + 2x2 max pool only
    run_case("pool_only", keys[1], N=2, Cin=4, H=16, W=16, no_conv=True,
             use_BN=True)
    # dilation=2, no bias, no BN, tanh, m_out < 128 (exercises lane padding)
    run_case("dilated_tanh", keys[2], N=2, Cin=4, H=10, W=16, Cout=8, K=3,
             dil=2, has_bias=False, no_conv=False, use_BN=False, act_fn="tanh")
    # larger spatial: exercises grid > 1 (lane-striped "parallel" axis)
    run_case("striped_grid", keys[3], N=2, Cin=4, H=48, W=48, Cout=16, K=3,
             dil=1, has_bias=True, no_conv=False, use_BN=True, act_fn="relu")

    print("KERNEL_OK")
</pallas_src>

<mosaic_0001>
module attributes {stable_mosaic.version = 11 : i64} {
  func.func @_conv_pool_kernel(%arg0: i32, %arg1: memref<4x40x128xf32, #tpu.memory_space<vmem>>, %arg2: memref<8x40xf32, #tpu.memory_space<vmem>>, %arg3: memref<8x1xf32, #tpu.memory_space<vmem>>, %arg4: memref<8x128xf32, #tpu.memory_space<vmem>>) attributes {dimension_semantics = [#tpu.dimension_semantics<parallel>], iteration_bounds = array<i64: 1>, scalar_prefetch = 0 : i64, scratch_operands = 0 : i64, tpu.core_type = #tpu.core_type<tc>, window_params = [{transform_indices = @transform_0, window_bounds = array<i64: 4, 40, 128>}, {pipeline_mode = #tpu.pipeline_mode<synchronous>, transform_indices = @transform_1, window_bounds = array<i64: 8, 40>}, {pipeline_mode = #tpu.pipeline_mode<synchronous>, transform_indices = @transform_2, window_bounds = array<i64: 8, 1>}, {transform_indices = @transform_3, window_bounds = array<i64: 8, 128>}]} {
    %c0 = arith.constant 0 : index
    %c0_0 = arith.constant 0 : index
    %0 = vector.load %arg2[%c0, %c0_0] : memref<8x40xf32, #tpu.memory_space<vmem>>, vector<8x40xf32>
    %c0_1 = arith.constant 0 : index
    %c0_2 = arith.constant 0 : index
    %c0_3 = arith.constant 0 : index
    %1 = vector.load %arg1[%c0_1, %c0_2, %c0_3] : memref<4x40x128xf32, #tpu.memory_space<vmem>>, vector<1x40x128xf32>
    %2 = vector.shape_cast %1 : vector<1x40x128xf32> to vector<40x128xf32>
    %cst = arith.constant dense<0.000000e+00> : vector<8x128xf32>
    %3 = tpu.matmul %0, %2, %cst {dimension_numbers = #tpu.dot_dimension_numbers<[1], [0], [0], [1], [0, 0, 1, 1], [], []>} : vector<8x40xf32>, vector<40x128xf32>, vector<8x128xf32> -> vector<8x128xf32>
    %c1 = arith.constant 1 : index
    %c0_4 = arith.constant 0 : index
    %c0_5 = arith.constant 0 : index
    %4 = vector.load %arg1[%c1, %c0_4, %c0_5] : memref<4x40x128xf32, #tpu.memory_space<vmem>>, vector<1x40x128xf32>
    %5 = vector.shape_cast %4 : vector<1x40x128xf32> to vector<40x128xf32>
    %cst_6 = arith.constant dense<0.000000e+00> : vector<8x128xf32>
    %6 = tpu.matmul %0, %5, %cst_6 {dimension_numbers = #tpu.dot_dimension_numbers<[1], [0], [0], [1], [0, 0, 1, 1], [], []>} : vector<8x40xf32>, vector<40x128xf32>, vector<8x128xf32> -> vector<8x128xf32>
    %7 = arith.maximumf %3, %6 : vector<8x128xf32>
    %c2 = arith.constant 2 : index
    %c0_7 = arith.constant 0 : index
    %c0_8 = arith.constant 0 : index
    %8 = vector.load %arg1[%c2, %c0_7, %c0_8] : memref<4x40x128xf32, #tpu.memory_space<vmem>>, vector<1x40x128xf32>
    %9 = vector.shape_cast %8 : vector<1x40x128xf32> to vector<40x128xf32>
    %cst_9 = arith.constant dense<0.000000e+00> : vector<8x128xf32>
    %10 = tpu.matmul %0, %9, %cst_9 {dimension_numbers = #tpu.dot_dimension_numbers<[1], [0], [0], [1], [0, 0, 1, 1], [], []>} : vector<8x40xf32>, vector<40x128xf32>, vector<8x128xf32> -> vector<8x128xf32>
    %11 = arith.maximumf %7, %10 : vector<8x128xf32>
    %c3 = arith.constant 3 : index
    %c0_10 = arith.constant 0 : index
    %c0_11 = arith.constant 0 : index
    %12 = vector.load %arg1[%c3, %c0_10, %c0_11] : memref<4x40x128xf32, #tpu.memory_space<vmem>>, vector<1x40x128xf32>
    %13 = vector.shape_cast %12 : vector<1x40x128xf32> to vector<40x128xf32>
    %cst_12 = arith.constant dense<0.000000e+00> : vector<8x128xf32>
    %14 = tpu.matmul %0, %13, %cst_12 {dimension_numbers = #tpu.dot_dimension_numbers<[1], [0], [0], [1], [0, 0, 1, 1], [], []>} : vector<8x40xf32>, vector<40x128xf32>, vector<8x128xf32> -> vector<8x128xf32>
    %15 = arith.maximumf %11, %14 : vector<8x128xf32>
    %c0_13 = arith.constant 0 : index
    %c0_14 = arith.constant 0 : index
    %16 = vector.load %arg3[%c0_13, %c0_14] : memref<8x1xf32, #tpu.memory_space<vmem>>, vector<8x1xf32>
    %17 = vector.broadcast %16 : vector<8x1xf32> to vector<8x128xf32>
    %18 = arith.addf %15, %17 : vector<8x128xf32>
    %cst_15 = arith.constant 0.000000e+00 : f32
    %19 = vector.broadcast %cst_15 : f32 to vector<8x128xf32>
    %20 = arith.maximumf %18, %19 : vector<8x128xf32>
    %c0_16 = arith.constant 0 : index
    %c0_17 = arith.constant 0 : index
    %21 = vector.load %arg4[%c0_16, %c0_17] : memref<8x128xf32, #tpu.memory_space<vmem>>, vector<8x128xf32>
    tpu.vector_store %arg4[%c0_16, %c0_17], %20 {strides = array<i32>} : memref<8x128xf32, #tpu.memory_space<vmem>>, vector<8x128xf32>,
    return
  }
  func.func @transform_0(%arg0: i32) -> (i32, i32, i32) {
    %c0_i32 = arith.constant 0 : i32
    %c0_i32_0 = arith.constant 0 : i32
    %c0_i32_1 = arith.constant 0 : i32
    return %c0_i32, %c0_i32_0, %arg0 : i32, i32, i32
  }
  func.func @transform_1(%arg0: i32) -> (i32, i32) {
    %c0_i32 = arith.constant 0 : i32
    %c0_i32_0 = arith.constant 0 : i32
    %c0_i32_1 = arith.constant 0 : i32
    return %c0_i32, %c0_i32_0 : i32, i32
  }
  func.func @transform_2(%arg0: i32) -> (i32, i32) {
    %c0_i32 = arith.constant 0 : i32
    %c0_i32_0 = arith.constant 0 : i32
    %c0_i32_1 = arith.constant 0 : i32
    return %c0_i32, %c0_i32_0 : i32, i32
  }
  func.func @transform_3(%arg0: i32) -> (i32, i32) {
    %c0_i32 = arith.constant 0 : i32
    %c0_i32_0 = arith.constant 0 : i32
    return %c0_i32, %arg0 : i32, i32
  }
}

</mosaic_0001>

<llo_original>
// kernel: acell_forward.1
$region0: #{acell_forward.1}
  #allocation0 [shape = 'u32[]', space=smem, size = 0x4, offset = 0x4, fixed_abs, tag = 'smem constant byte address 0x4 - core index']
  #allocation1 [shape = 'u32[144,128]{1,0:T(1,128)}', space=vmem, size = 0x12000, scoped, tag = 'internal scratch']
  %s0 = inlined_call_operand.vmem [shape: f32[4,40,128], index: 0, kind: input, shape index: {}]
  %s1 = inlined_call_operand.vmem [shape: f32[8,40], index: 1, kind: input, shape index: {}]
  %s2 = inlined_call_operand.vmem [shape: f32[8,1], index: 2, kind: input, shape index: {}]
  %s3 = inlined_call_operand.vmem [shape: f32[8,128], index: 3, kind: output, shape index: {}]
  %s4 = sld [smem:[#allocation0]]
  $region22: #{acell_forward.1} parent=0
    _
  %s6 = ssub.s32 1, %s4
  %s7 = scalar_select 0, %s6, %s4
  // Predicated region
  $region2: #{acell_forward.1} parent=0 // pred_check
    _
  $region3: #{acell_forward.1} parent=0 // pred_check_branch
    %9 = sbr.rel (0) target = $region5
  $region4: #{acell_forward.1} parent=0 // pred_region
    _
  $region5: #{acell_forward.1} parent=0 // pred_fallthru
    _
  // Predicated region
  $region6: #{acell_forward.1} parent=0 // pred_check
    _
  $region7: #{acell_forward.1} parent=0 // pred_check_branch
    %11 = sbr.rel (0) target = $region9
  $region8: #{acell_forward.1} parent=0 // pred_region
    _
  $region9: #{acell_forward.1} parent=0 // pred_fallthru
    _
  // Predicated region
  $region10: #{acell_forward.1} parent=0 // pred_check
    _
  $region11: #{acell_forward.1} parent=0 // pred_check_branch
    %13 = sbr.rel (0) target = $region13
  $region12: #{acell_forward.1} parent=0 // pred_region
    _
  $region13: #{acell_forward.1} parent=0 // pred_fallthru
    _
  %v14 = vld [vmem:[%s1] sm:$0xff]
  %v15 = vld [vmem:[%s0] sm:$0xff]
  %v16 = vld [vmem:[%s0 + $0x8] sm:$0xff]
  %v17 = vld [vmem:[%s0 + $0x10] sm:$0xff]
  %v18 = vld [vmem:[%s0 + $0x18] sm:$0xff]
  %v19 = vld [vmem:[%s0 + $0x20] sm:$0xff]
  %vm20 = vcmask 326656
  %v22 = vsel %vm20, %v14, 0
  %24 = vmatprep.subr.mxu0 0.0
  %25 = vmatpush1.msra.mxu0 %v15
  %26 = vmatprep.subr.mxu0 0.0
  %27 = vmatpush1.msra.mxu0 %v16
  %28 = vmatprep.subr.mxu0 0.0
  %29 = vmatpush1.msra.mxu0 %v17
  %30 = vmatprep.subr.mxu0 0.0
  %31 = vmatpush1.msra.mxu0 %v18
  %32 = vmatprep.subr.mxu0 0.0
  %33 = vmatpush1.msra.mxu0 %v19
  %34 = vmatprep.subr.mxu0 0.0
  %35 = vmatpush1.msra.mxu0 0.0
  %36 = vmatprep.subr.mxu0 0.0
  %37 = vmatpush1.msra.mxu0 0.0
  %38 = vmatprep.subr.mxu0 0.0
  %39 = vmatpush1.msra.mxu0 0.0
  %40 = vmatprep.subr.mxu0 0.0
  %41 = vmatpush1.msra.mxu0 0.0
  %42 = vmatprep.subr.mxu0 0.0
  %43 = vmatpush1.msra.mxu0 0.0
  %44 = vmatprep.subr.mxu0 0.0
  %45 = vmatpush1.msra.mxu0 0.0
  %46 = vmatprep.subr.mxu0 0.0
  %47 = vmatpush1.msra.mxu0 0.0
  %48 = vmatprep.subr.mxu0 0.0
  %49 = vmatpush1.msra.mxu0 0.0
  %50 = vmatprep.subr.mxu0 0.0
  %51 = vmatpush1.msra.mxu0 0.0
  %52 = vmatprep.subr.mxu0 0.0
  %53 = vmatpush1.msra.mxu0 0.0
  %54 = vmatprep.subr.mxu0 0.0
  %55 = vmatpush1.msra.mxu0 0.0
  %56 = vmatprep.subr.mxu0 0.0
  %57 = vmatpush1.msra.mxu0 0.0
  %58 = vmatprep.subr.mxu0 0.0
  %59 = vmatpush1.msra.mxu0 0.0
  %60 = vmatprep.subr.mxu0 0.0
  %61 = vmatpush1.msra.mxu0 0.0
  %62 = vmatprep.subr.mxu0 0.0
  %63 = vmatpush1.msra.mxu0 0.0
  %64 = vmatprep.subr.mxu0 0.0
  %65 = vmatpush1.msra.mxu0 0.0
  %66 = vmatprep.subr.mxu0 0.0
  %67 = vmatpush1.msra.mxu0 0.0
  %68 = vmatprep.subr.mxu0 0.0
  %69 = vmatpush1.msra.mxu0 0.0
  %70 = vmatprep.subr.mxu0 0.0
  %71 = vmatpush1.msra.mxu0 0.0
  %72 = vmatprep.subr.mxu0 0.0
  %73 = vmatpush1.msra.mxu0 0.0
  %74 = vmatprep.subr.mxu0 0.0
  %75 = vmatpush1.msra.mxu0 0.0
  %76 = vmatprep.subr.mxu0 0.0
  %77 = vmatpush1.msra.mxu0 0.0
  %78 = vmatprep.subr.mxu0 0.0
  %79 = vmatpush1.msra.mxu0 0.0
  %80 = vmatprep.subr.mxu0 0.0
  %81 = vmatpush1.msra.mxu0 0.0
  %82 = vmatprep.subr.mxu0 0.0
  %83 = vmatpush1.msra.mxu0 0.0
  %84 = vmatprep.subr.mxu0 0.0
  %85 = vmatpush1.msra.mxu0 0.0
  %86 = vmatprep.subr.mxu0 0.0
  %87 = vmatpush1.msra.mxu0 0.0
  %88 = vmatprep.mubr.f32.mxu0 0.0
  %89 = vmatmul.mubr.f32.gmra.mrb[0].mxu0 %v22
  %v90 = vpop.f32.mrb[0].mxu0
  %v91 = vadd.f32 0.0, %v90
  %v92 = vpop.f32.mrb[0].mxu0
  %93 = vdwg.mxu0
  %s94 = scalar_lea.vmem %s0, 40
  %v95 = vld [vmem:[%s94] sm:$0xff]
  %v96 = vld [vmem:[%s94 + $0x8] sm:$0xff]
  %v97 = vld [vmem:[%s94 + $0x10] sm:$0xff]
  %v98 = vld [vmem:[%s94 + $0x18] sm:$0xff]
  %v99 = vld [vmem:[%s94 + $0x20] sm:$0xff]
  %100 = vmatprep.subr.mxu0 0.0
  %101 = vmatpush1.msra.mxu0 %v95
  %102 = vmatprep.subr.mxu0 0.0
  %103 = vmatpush1.msra.mxu0 %v96
  %104 = vmatprep.subr.mxu0 0.0
  %105 = vmatpush1.msra.mxu0 %v97
  %106 = vmatprep.subr.mxu0 0.0
  %107 = vmatpush1.msra.mxu0 %v98
  %108 = vmatprep.subr.mxu0 0.0
  %109 = vmatpush1.msra.mxu0 %v99
  %110 = vmatprep.subr.mxu0 0.0
  %111 = vmatpush1.msra.mxu0 0.0
  %112 = vmatprep.subr.mxu0 0.0
  %113 = vmatpush1.msra.mxu0 0.0
  %114 = vmatprep.subr.mxu0 0.0
  %115 = vmatpush1.msra.mxu0 0.0
  %116 = vmatprep.subr.mxu0 0.0
  %117 = vmatpush1.msra.mxu0 0.0
  %118 = vmatprep.subr.mxu0 0.0
  %119 = vmatpush1.msra.mxu0 0.0
  %120 = vmatprep.subr.mxu0 0.0
  %121 = vmatpush1.msra.mxu0 0.0
  %122 = vmatprep.subr.mxu0 0.0
  %123 = vmatpush1.msra.mxu0 0.0
  %124 = vmatprep.subr.mxu0 0.0
  %125 = vmatpush1.msra.mxu0 0.0
  %126 = vmatprep.subr.mxu0 0.0
  %127 = vmatpush1.msra.mxu0 0.0
  %128 = vmatprep.subr.mxu0 0.0
  %129 = vmatpush1.msra.mxu0 0.0
  %130 = vmatprep.subr.mxu0 0.0
  %131 = vmatpush1.msra.mxu0 0.0
  %132 = vmatprep.subr.mxu0 0.0
  %133 = vmatpush1.msra.mxu0 0.0
  %134 = vmatprep.subr.mxu0 0.0
  %135 = vmatpush1.msra.mxu0 0.0
  %136 = vmatprep.subr.mxu0 0.0
  %137 = vmatpush1.msra.mxu0 0.0
  %138 = vmatprep.subr.mxu0 0.0
  %139 = vmatpush1.msra.mxu0 0.0
  %140 = vmatprep.subr.mxu0 0.0
  %141 = vmatpush1.msra.mxu0 0.0
  %142 = vmatprep.subr.mxu0 0.0
  %143 = vmatpush1.msra.mxu0 0.0
  %144 = vmatprep.subr.mxu0 0.0
  %145 = vmatpush1.msra.mxu0 0.0
  %146 = vmatprep.subr.mxu0 0.0
  %147 = vmatpush1.msra.mxu0 0.0
  %148 = vmatprep.subr.mxu0 0.0
  %149 = vmatpush1.msra.mxu0 0.0
  %150 = vmatprep.subr.mxu0 0.0
  %151 = vmatpush1.msra.mxu0 0.0
  %152 = vmatprep.subr.mxu0 0.0
  %153 = vmatpush1.msra.mxu0 0.0
  %154 = vmatprep.subr.mxu0 0.0
  %155 = vmatpush1.msra.mxu0 0.0
  %156 = vmatprep.subr.mxu0 0.0
  %157 = vmatpush1.msra.mxu0 0.0
  %158 = vmatprep.subr.mxu0 0.0
  %159 = vmatpush1.msra.mxu0 0.0
  %160 = vmatprep.subr.mxu0 0.0
  %161 = vmatpush1.msra.mxu0 0.0
  %162 = vmatprep.subr.mxu0 0.0
  %163 = vmatpush1.msra.mxu0 0.0
  %164 = vmatprep.mubr.f32.mxu0 0.0
  %165 = vmatmul.mubr.f32.gmra.mrb[0].mxu0 %v22
  %v166 = vpop.f32.mrb[0].mxu0
  %v167 = vadd.f32 0.0, %v166
  %v168 = vpop.f32.mrb[0].mxu0
  %169 = vdwg.mxu0
  %v170 = vmax.f32 %v91, %v167
  %s171 = scalar_lea.vmem %s0, 80
  %v172 = vld [vmem:[%s171] sm:$0xff]
  %v173 = vld [vmem:[%s171 + $0x8] sm:$0xff]
  %v174 = vld [vmem:[%s171 + $0x10] sm:$0xff]
  %v175 = vld [vmem:[%s171 + $0x18] sm:$0xff]
  %v176 = vld [vmem:[%s171 + $0x20] sm:$0xff]
  %177 = vmatprep.subr.mxu0 0.0
  %178 = vmatpush1.msra.mxu0 %v172
  %179 = vmatprep.subr.mxu0 0.0
  %180 = vmatpush1.msra.mxu0 %v173
  %181 = vmatprep.subr.mxu0 0.0
  %182 = vmatpush1.msra.mxu0 %v174
  %183 = vmatprep.subr.mxu0 0.0
  %184 = vmatpush1.msra.mxu0 %v175
  %185 = vmatprep.subr.mxu0 0.0
  %186 = vmatpush1.msra.mxu0 %v176
  %187 = vmatprep.subr.mxu0 0.0
  %188 = vmatpush1.msra.mxu0 0.0
  %189 = vmatprep.subr.mxu0 0.0
  %190 = vmatpush1.msra.mxu0 0.0
  %191 = vmatprep.subr.mxu0 0.0
  %192 = vmatpush1.msra.mxu0 0.0
  %193 = vmatprep.subr.mxu0 0.0
  %194 = vmatpush1.msra.mxu0 0.0
  %195 = vmatprep.subr.mxu0 0.0
  %196 = vmatpush1.msra.mxu0 0.0
  %197 = vmatprep.subr.mxu0 0.0
  %198 = vmatpush1.msra.mxu0 0.0
  %199 = vmatprep.subr.mxu0 0.0
  %200 = vmatpush1.msra.mxu0 0.0
  %201 = vmatprep.subr.mxu0 0.0
  %202 = vmatpush1.msra.mxu0 0.0
  %203 = vmatprep.subr.mxu0 0.0
  %204 = vmatpush1.msra.mxu0 0.0
  %205 = vmatprep.subr.mxu0 0.0
  %206 = vmatpush1.msra.mxu0 0.0
  %207 = vmatprep.subr.mxu0 0.0
  %208 = vmatpush1.msra.mxu0 0.0
  %209 = vmatprep.subr.mxu0 0.0
  %210 = vmatpush1.msra.mxu0 0.0
  %211 = vmatprep.subr.mxu0 0.0
  %212 = vmatpush1.msra.mxu0 0.0
  %213 = vmatprep.subr.mxu0 0.0
  %214 = vmatpush1.msra.mxu0 0.0
  %215 = vmatprep.subr.mxu0 0.0
  %216 = vmatpush1.msra.mxu0 0.0
  %217 = vmatprep.subr.mxu0 0.0
  %218 = vmatpush1.msra.mxu0 0.0
  %219 = vmatprep.subr.mxu0 0.0
  %220 = vmatpush1.msra.mxu0 0.0
  %221 = vmatprep.subr.mxu0 0.0
  %222 = vmatpush1.msra.mxu0 0.0
  %223 = vmatprep.subr.mxu0 0.0
  %224 = vmatpush1.msra.mxu0 0.0
  %225 = vmatprep.subr.mxu0 0.0
  %226 = vmatpush1.msra.mxu0 0.0
  %227 = vmatprep.subr.mxu0 0.0
  %228 = vmatpush1.msra.mxu0 0.0
  %229 = vmatprep.subr.mxu0 0.0
  %230 = vmatpush1.msra.mxu0 0.0
  %231 = vmatprep.subr.mxu0 0.0
  %232 = vmatpush1.msra.mxu0 0.0
  %233 = vmatprep.subr.mxu0 0.0
  %234 = vmatpush1.msra.mxu0 0.0
  %235 = vmatprep.subr.mxu0 0.0
  %236 = vmatpush1.msra.mxu0 0.0
  %237 = vmatprep.subr.mxu0 0.0
  %238 = vmatpush1.msra.mxu0 0.0
  %239 = vmatprep.subr.mxu0 0.0
  %240 = vmatpush1.msra.mxu0 0.0
  %241 = vmatprep.mubr.f32.mxu0 0.0
  %242 = vmatmul.mubr.f32.gmra.mrb[0].mxu0 %v22
  %v243 = vpop.f32.mrb[0].mxu0
  %v244 = vadd.f32 0.0, %v243
  %v245 = vpop.f32.mrb[0].mxu0
  %246 = vdwg.mxu0
  %v247 = vmax.f32 %v170, %v244
  %s248 = scalar_lea.vmem %s0, 120
  %v249 = vld [vmem:[%s248] sm:$0xff]
  %v250 = vld [vmem:[%s248 + $0x8] sm:$0xff]
  %v251 = vld [vmem:[%s248 + $0x10] sm:$0xff]
  %v252 = vld [vmem:[%s248 + $0x18] sm:$0xff]
  %v253 = vld [vmem:[%s248 + $0x20] sm:$0xff]
  %254 = vmatprep.subr.mxu0 0.0
  %255 = vmatpush1.msra.mxu0 %v249
  %256 = vmatprep.subr.mxu0 0.0
  %257 = vmatpush1.msra.mxu0 %v250
  %258 = vmatprep.subr.mxu0 0.0
  %259 = vmatpush1.msra.mxu0 %v251
  %260 = vmatprep.subr.mxu0 0.0
  %261 = vmatpush1.msra.mxu0 %v252
  %262 = vmatprep.subr.mxu0 0.0
  %263 = vmatpush1.msra.mxu0 %v253
  %264 = vmatprep.subr.mxu0 0.0
  %265 = vmatpush1.msra.mxu0 0.0
  %266 = vmatprep.subr.mxu0 0.0
  %267 = vmatpush1.msra.mxu0 0.0
  %268 = vmatprep.subr.mxu0 0.0
  %269 = vmatpush1.msra.mxu0 0.0
  %270 = vmatprep.subr.mxu0 0.0
  %271 = vmatpush1.msra.mxu0 0.0
  %272 = vmatprep.subr.mxu0 0.0
  %273 = vmatpush1.msra.mxu0 0.0
  %274 = vmatprep.subr.mxu0 0.0
  %275 = vmatpush1.msra.mxu0 0.0
  %276 = vmatprep.subr.mxu0 0.0
  %277 = vmatpush1.msra.mxu0 0.0
  %278 = vmatprep.subr.mxu0 0.0
  %279 = vmatpush1.msra.mxu0 0.0
  %280 = vmatprep.subr.mxu0 0.0
  %281 = vmatpush1.msra.mxu0 0.0
  %282 = vmatprep.subr.mxu0 0.0
  %283 = vmatpush1.msra.mxu0 0.0
  %284 = vmatprep.subr.mxu0 0.0
  %285 = vmatpush1.msra.mxu0 0.0
  %286 = vmatprep.subr.mxu0 0.0
  %287 = vmatpush1.msra.mxu0 0.0
  %288 = vmatprep.subr.mxu0 0.0
  %289 = vmatpush1.msra.mxu0 0.0
  %290 = vmatprep.subr.mxu0 0.0
  %291 = vmatpush1.msra.mxu0 0.0
  %292 = vmatprep.subr.mxu0 0.0
  %293 = vmatpush1.msra.mxu0 0.0
  %294 = vmatprep.subr.mxu0 0.0
  %295 = vmatpush1.msra.mxu0 0.0
  %296 = vmatprep.subr.mxu0 0.0
  %297 = vmatpush1.msra.mxu0 0.0
  %298 = vmatprep.subr.mxu0 0.0
  %299 = vmatpush1.msra.mxu0 0.0
  %300 = vmatprep.subr.mxu0 0.0
  %301 = vmatpush1.msra.mxu0 0.0
  %302 = vmatprep.subr.mxu0 0.0
  %303 = vmatpush1.msra.mxu0 0.0
  %304 = vmatprep.subr.mxu0 0.0
  %305 = vmatpush1.msra.mxu0 0.0
  %306 = vmatprep.subr.mxu0 0.0
  %307 = vmatpush1.msra.mxu0 0.0
  %308 = vmatprep.subr.mxu0 0.0
  %309 = vmatpush1.msra.mxu0 0.0
  %310 = vmatprep.subr.mxu0 0.0
  %311 = vmatpush1.msra.mxu0 0.0
  %312 = vmatprep.subr.mxu0 0.0
  %313 = vmatpush1.msra.mxu0 0.0
  %314 = vmatprep.subr.mxu0 0.0
  %315 = vmatpush1.msra.mxu0 0.0
  %316 = vmatprep.subr.mxu0 0.0
  %317 = vmatpush1.msra.mxu0 0.0
  %318 = vmatprep.mubr.f32.mxu0 0.0
  %319 = vmatmul.mubr.f32.gmra.mrb[0].mxu0 %v22
  %v320 = vpop.f32.mrb[0].mxu0
  %v321 = vadd.f32 0.0, %v320
  %v322 = vpop.f32.mrb[0].mxu0
  %323 = vdwg.mxu0
  %v324 = vmax.f32 %v247, %v321
  %v325 = vld [vmem:[%s2] sm:$0xff]
  %327 = vset.pattern.permute.xlu0 0
  %328 = vperm.xlu0 %327, %v325
  %v329 = vpop.permute.xlu0 %328
  %v331 = vadd.f32 %v324, %v329
  %v332 = vmax.f32 %v331, 0.0
  %333 = vst [vmem:[%s3] sm:$0xff] %v332
  // Predicated region
  $region14: #{acell_forward.1} parent=0 // pred_check
    _
  $region15: #{acell_forward.1} parent=0 // pred_check_branch
    %335 = sbr.rel (0) target = $region17
  $region16: #{acell_forward.1} parent=0 // pred_region
    _
  $region17: #{acell_forward.1} parent=0 // pred_fallthru
    _
  // Predicated region
  $region18: #{acell_forward.1} parent=0 // pred_check
    _
  $region19: #{acell_forward.1} parent=0 // pred_check_branch
    %337 = sbr.rel (0) target = $region21
  $region20: #{acell_forward.1} parent=0 // pred_region
    _
  $region21: #{acell_forward.1} parent=0 // pred_fallthru
    _

</llo_original>
